<compile_context>
chip_gen: v7x
topology: tpu7x:2x2x1
jax: 0.10.0
libtpu: 0.0.40
codegen_flags: <defaults>
</compile_context>

<pallas_src>
import jax
import jax.numpy as jnp
from jax.experimental import pallas as pl
from jax.experimental.pallas import tpu as pltpu


def _lbd_kernel(keep_ref, x_ref, u_ref, o_ref):
    # keep_ref: (1,) f32 in SMEM -> keep probability (1 - sigmoid(alpha)).
    # Bernoulli(keep_prob) mask via compare + select, no rescaling (matches PyTorch).
    keep_prob = keep_ref[0]
    o_ref[...] = jnp.where(u_ref[...] < keep_prob,
                           x_ref[...],
                           jnp.zeros_like(x_ref[...])).astype(o_ref.dtype)


def learnable_bernoulli_dropout(x, alpha, key, *, training=True):
    """JAX/Pallas equivalent of LearnableBernoulliDropout.forward."""
    if not training:
        # Eval path is the identity — no kernel needed.
        return x

    orig_shape = x.shape
    orig_dtype = x.dtype
    n = x.size

    # keep probability (computed once, outside the grid loop).
    keep_prob = (1.0 - jax.nn.sigmoid(jnp.asarray(alpha, jnp.float32)))
    keep_arr = jnp.reshape(keep_prob, (1,)).astype(jnp.float32)

    # Lane-dense slab: prefer a wide last dim (bigger contiguous DMA bursts,
    # unmasked vector stores); fall back to 128 and pad only if needed.
    LANE = 1024 if n % 1024 == 0 else 128
    flat = x.reshape(-1)
    rem = (-n) % LANE
    if rem:
        flat = jnp.pad(flat, (0, rem))
    rows = flat.shape[0] // LANE

    # ~2 MiB f32 per block (512 x 1024 or 4096 x 128). With double-buffered
    # x, u and out that is ~12 MiB VMEM — fits every generation's scoped limit.
    bytes_per_elem = 4
    tr_target = max(8, (2 * 1024 * 1024) // (LANE * bytes_per_elem))
    if rows <= tr_target:
        tr = rows                      # single block == full array dims (allowed)
    else:
        tr = tr_target                 # multiple of 8 by construction
        pad_rows = (-rows) % tr
        if pad_rows:
            flat = jnp.pad(flat, (0, pad_rows * LANE))
            rows += pad_rows

    x2d = flat.reshape(rows, LANE)
    u2d = jax.random.uniform(key, (rows, LANE), dtype=jnp.float32)

    grid = (rows // tr,)

    out2d = pl.pallas_call(
        _lbd_kernel,
        out_shape=jax.ShapeDtypeStruct((rows, LANE), orig_dtype),
        grid=grid,
        in_specs=[
            pl.BlockSpec(memory_space=pltpu.MemorySpace.SMEM),      # keep_prob
            pl.BlockSpec((tr, LANE), lambda i: (i, 0)),             # x tile
            pl.BlockSpec((tr, LANE), lambda i: (i, 0)),             # uniform tile
        ],
        out_specs=pl.BlockSpec((tr, LANE), lambda i: (i, 0)),
        compiler_params=pltpu.CompilerParams(
            dimension_semantics=("parallel",),
        ),
    )(keep_arr, x2d, u2d)

    out = out2d.reshape(-1)
    if out.shape[0] != n:
        out = out[:n]
    return out.reshape(orig_shape)


if __name__ == "__main__":
    root_key = jax.random.PRNGKey(0)
    data_key, drop_key = jax.random.split(root_key)

    # Deterministic parameter init: module __init__ sets alpha = 0.5.
    alpha = jnp.float32(0.5)

    # Small NCHW input consistent with a conv-style model.
    x = jax.random.normal(data_key, (2, 4, 16, 16), dtype=jnp.float32)

    # Training path (Bernoulli mask applied in-kernel via compare + select).
    y_train = learnable_bernoulli_dropout(x, alpha, drop_key, training=True)
    y_train = jax.block_until_ready(y_train)

    # Sanity: every output element is either 0 (dropped) or equal to x (kept).
    assert bool(jnp.all((y_train == x) | (y_train == 0.0)))
    # Keep fraction should be roughly 1 - sigmoid(0.5) ~ 0.3775.
    frac = float(jnp.mean((y_train != 0.0).astype(jnp.float32)))
    assert 0.25 < frac < 0.50, f"unexpected keep fraction {frac}"

    # Eval path is the identity.
    y_eval = learnable_bernoulli_dropout(x, alpha, drop_key, training=False)
    y_eval = jax.block_until_ready(y_eval)
    assert bool(jnp.all(y_eval == x))

    print("KERNEL_OK")
</pallas_src>

<mosaic_0001>
module attributes {stable_mosaic.version = 11 : i64} {
  func.func @_lbd_kernel(%arg0: i32, %arg1: memref<1xf32, #tpu.memory_space<smem>>, %arg2: memref<2x1024xf32, #tpu.memory_space<vmem>>, %arg3: memref<2x1024xf32, #tpu.memory_space<vmem>>, %arg4: memref<2x1024xf32, #tpu.memory_space<vmem>>) attributes {dimension_semantics = [#tpu.dimension_semantics<parallel>], iteration_bounds = array<i64: 1>, scalar_prefetch = 0 : i64, scratch_operands = 0 : i64, tpu.core_type = #tpu.core_type<tc>, window_params = [{transform_indices = @transform_0, window_bounds = array<i64: 1>}, {transform_indices = @transform_1, window_bounds = array<i64: 2, 1024>}, {transform_indices = @transform_2, window_bounds = array<i64: 2, 1024>}, {transform_indices = @transform_3, window_bounds = array<i64: 2, 1024>}]} {
    %c0 = arith.constant 0 : index
    %0 = memref.load %arg1[%c0] : memref<1xf32, #tpu.memory_space<smem>>
    %c0_0 = arith.constant 0 : index
    %c0_1 = arith.constant 0 : index
    %1 = vector.load %arg3[%c0_0, %c0_1] : memref<2x1024xf32, #tpu.memory_space<vmem>>, vector<2x1024xf32>
    %2 = vector.broadcast %0 : f32 to vector<2x1024xf32>
    %3 = arith.cmpf olt, %1, %2 : vector<2x1024xf32>
    %c0_2 = arith.constant 0 : index
    %c0_3 = arith.constant 0 : index
    %4 = vector.load %arg2[%c0_2, %c0_3] : memref<2x1024xf32, #tpu.memory_space<vmem>>, vector<2x1024xf32>
    %cst = arith.constant 0.000000e+00 : f32
    %5 = vector.broadcast %cst : f32 to vector<2x1024xf32>
    %6 = arith.select %3, %4, %5 : vector<2x1024xi1>, vector<2x1024xf32>
    %c0_4 = arith.constant 0 : index
    %c0_5 = arith.constant 0 : index
    %7 = vector.load %arg4[%c0_4, %c0_5] : memref<2x1024xf32, #tpu.memory_space<vmem>>, vector<2x1024xf32>
    tpu.vector_store %arg4[%c0_4, %c0_5], %6 {strides = array<i32>} : memref<2x1024xf32, #tpu.memory_space<vmem>>, vector<2x1024xf32>,
    return
  }
  func.func @transform_0(%arg0: i32) -> i32 {
    %c0_i32 = arith.constant 0 : i32
    %c0_i32_0 = arith.constant 0 : i32
    return %c0_i32 : i32
  }
  func.func @transform_1(%arg0: i32) -> (i32, i32) {
    %c0_i32 = arith.constant 0 : i32
    %c0_i32_0 = arith.constant 0 : i32
    return %arg0, %c0_i32 : i32, i32
  }
  func.func @transform_2(%arg0: i32) -> (i32, i32) {
    %c0_i32 = arith.constant 0 : i32
    %c0_i32_0 = arith.constant 0 : i32
    return %arg0, %c0_i32 : i32, i32
  }
  func.func @transform_3(%arg0: i32) -> (i32, i32) {
    %c0_i32 = arith.constant 0 : i32
    %c0_i32_0 = arith.constant 0 : i32
    return %arg0, %c0_i32 : i32, i32
  }
}

</mosaic_0001>

<llo_original>
// kernel: tpu_custom_call.1
$region0: #{tpu_custom_call.1}
  #allocation0 [shape = 'u32[]', space=smem, size = 0x4, offset = 0x4, fixed_abs, tag = 'smem constant byte address 0x4 - core index']
  #allocation1 [shape = 'u32[144,128]{1,0:T(1,128)}', space=vmem, size = 0x12000, scoped, tag = 'internal scratch']
  #allocation2 [shape = 'f32[1]{0:T(128)S(6)}', space=smem, size = 0x200, scoped, tag = 'scoped memory for tpu_custom_call.1']
  %s0 = inlined_call_operand.<no memory space> [shape: f32[1], index: 0, kind: input, shape index: {}]
  %s1 = inlined_call_operand.hbm [shape: f32[2,1024], index: 1, kind: input, shape index: {}]
  %s2 = inlined_call_operand.hbm [shape: f32[2,1024], index: 2, kind: input, shape index: {}]
  %s3 = inlined_call_operand.hbm [shape: f32[2,1024], index: 3, kind: output, shape index: {}]
  %s4 = sld [smem:[#allocation0]]
  $region30: #{tpu_custom_call.1} parent=0
    _
  %s6 = ssub.s32 1, %s4
  %s7 = scalar_select 0, %s6, %s4
  %8 = sst [smem:[#allocation2]] %s0
  $region1: #{tpu_custom_call.1} parent=0
    #allocation3 [shape = 'u8[8192]{0}', space=vmem, size = 0x2000, scoped, tag = 'input window, operand 1, single buffered']
    #allocation4 [shape = 's32[1]{0}', space=sflag, size = 0x4, scoped, tag = 'scoped memory for tpu_custom_call.1']
    #allocation5 [shape = 's32[1]{0}', space=sflag, size = 0x4, scoped, tag = 'scoped memory for tpu_custom_call.1']
    #allocation6 [shape = 'u8[8192]{0}', space=vmem, size = 0x2000, scoped, tag = 'input window, operand 2, single buffered']
    #allocation7 [shape = 's32[1]{0}', space=sflag, size = 0x4, scoped, tag = 'scoped memory for tpu_custom_call.1']
    #allocation8 [shape = 'u8[8192]{0}', space=vmem, size = 0x2000, scoped, tag = 'output window, operand 0, single buffered']
    %9 = vsyncpa [#allocation4], 0
    %10 = vsyncpa [#allocation7], 0
    %11 = vsyncpa [#allocation5], 0
    // Predicated region
    $region2: #{tpu_custom_call.1} parent=1 // pred_check
      _
    $region3: #{tpu_custom_call.1} parent=1 // pred_check_branch
      %13 = sbr.rel (0) target = $region5
    $region4: #{tpu_custom_call.1} parent=1 // pred_region
      _
    $region5: #{tpu_custom_call.1} parent=1 // pred_fallthru
      _
    // Predicated region
    $region6: #{tpu_custom_call.1} parent=1 // pred_check
      _
    $region7: #{tpu_custom_call.1} parent=1 // pred_check_branch
      %15 = sbr.rel (0) target = $region9
    $region8: #{tpu_custom_call.1} parent=1 // pred_region
      %s17 = ssub.s32 256, 256
      %18 = vsyncadd [#allocation4], %s17
      %s20 = sshll.u32 [#allocation3], 4
      %s21 = int_to_ptr.vmem [resolvable:$true] %s20
      %23 = dma.hbm_to_vmem [thread:$0]  %s1, 256, %s21, [#allocation4]
    $region9: #{tpu_custom_call.1} parent=1 // pred_fallthru
      _
    // Predicated region
    $region10: #{tpu_custom_call.1} parent=1 // pred_check
      _
    $region11: #{tpu_custom_call.1} parent=1 // pred_check_branch
      %25 = sbr.rel (0) target = $region13
    $region12: #{tpu_custom_call.1} parent=1 // pred_region
      %s27 = ssub.s32 256, 256
      %28 = vsyncadd [#allocation7], %s27
      %s30 = sshll.u32 [#allocation6], 4
      %s31 = int_to_ptr.vmem [resolvable:$true] %s30
      %33 = dma.hbm_to_vmem [thread:$0]  %s2, 256, %s31, [#allocation7]
    $region13: #{tpu_custom_call.1} parent=1 // pred_fallthru
      _
    // Predicated region
    $region14: #{tpu_custom_call.1} parent=1 // pred_check
      _
    $region15: #{tpu_custom_call.1} parent=1 // pred_check_branch
      %35 = sbr.rel (0) target = $region17
    $region16: #{tpu_custom_call.1} parent=1 // pred_region
      %36 = dma.done [#allocation4], 256
    $region17: #{tpu_custom_call.1} parent=1 // pred_fallthru
      _
    // Predicated region
    $region18: #{tpu_custom_call.1} parent=1 // pred_check
      _
    $region19: #{tpu_custom_call.1} parent=1 // pred_check_branch
      %38 = sbr.rel (0) target = $region21
    $region20: #{tpu_custom_call.1} parent=1 // pred_region
      %39 = dma.done [#allocation7], 256
    $region21: #{tpu_custom_call.1} parent=1 // pred_fallthru
      _
    %s40 = sld [smem:[#allocation2]]
    %v41 = vld [vmem:[#allocation6] sm:$0xff]
    %v42 = vld [vmem:[#allocation6 + $0x8] sm:$0xff]
    %v43 = vstv %s40
    %vm44 = vcmp.lt.f32.partialorder %v41, %v43
    %vm45 = vcmp.lt.f32.partialorder %v42, %v43
    %v46 = vld [vmem:[#allocation3] sm:$0xff]
    %v47 = vld [vmem:[#allocation3 + $0x8] sm:$0xff]
    %v48 = vsel %vm44, %v46, 0.0
    %v49 = vsel %vm45, %v47, 0.0
    %50 = vst [vmem:[#allocation8] sm:$0xff] %v48
    %51 = vst [vmem:[#allocation8 + $0x8] sm:$0xff] %v49
    // Predicated region
    $region22: #{tpu_custom_call.1} parent=1 // pred_check
      _
    $region23: #{tpu_custom_call.1} parent=1 // pred_check_branch
      %53 = sbr.rel (0) target = $region25
    $region24: #{tpu_custom_call.1} parent=1 // pred_region
      %s55 = ssub.s32 256, 256
      %56 = vsyncadd [#allocation5], %s55
      %s58 = sshll.u32 [#allocation8], 4
      %s59 = int_to_ptr.vmem [resolvable:$true] %s58
      %61 = dma.vmem_to_hbm [thread:$0]  %s59, 256, %s3, [#allocation5]
    $region25: #{tpu_custom_call.1} parent=1 // pred_fallthru
      _
    // Predicated region
    $region26: #{tpu_custom_call.1} parent=1 // pred_check
      _
    $region27: #{tpu_custom_call.1} parent=1 // pred_check_branch
      %63 = sbr.rel (0) target = $region29
    $region28: #{tpu_custom_call.1} parent=1 // pred_region
      %64 = dma.done [#allocation5], 256
    $region29: #{tpu_custom_call.1} parent=1 // pred_fallthru
      _
    %65 = vsyncpa [#allocation4], 1
    %66 = vsyncpa [#allocation7], 1
    %67 = vsyncpa [#allocation5], 1

</llo_original>
